<compile_context>
chip_gen: v7x
topology: tpu7x:2x2x1
jax: 0.10.0
libtpu: 0.0.40
codegen_flags: <defaults>
</compile_context>

<pallas_src>
import functools

import jax
import jax.numpy as jnp
from jax.experimental import pallas as pl
from jax.experimental.pallas import tpu as pltpu

# ------------------------ model hyper-parameters (small) --------------------
VOCAB_SIZE = 128
HIDDEN_DIM = 128          # = 128 so every block is lane-dense (no vst.msk)
MAX_POS = 16
PAD_TOKEN_ID = 0
BATCH = 2
SEQ = 8
LN_EPS = 1e-5             # torch.nn.LayerNorm default


# ------------------------------- kernel -------------------------------------
def embeddings_kernel(ids_ref, word_hbm, pos_ref, ln_ref, out_ref,
                      gather_buf, sem, *, seq, eps):
    """One grid step = one sequence (S rows of the flattened (B*S, H) output)."""
    b = pl.program_id(0)

    # ---- word-embedding gather: S per-row DMAs from the HBM table ----------
    copies = []
    for s in range(seq):                               # static trip count
        tok = ids_ref[b * seq + s]                     # scalar read from SMEM
        cp = pltpu.make_async_copy(
            word_hbm.at[pl.ds(tok, 1), :],             # (1, H) row in HBM
            gather_buf.at[pl.ds(s, 1), :],             # (1, H) row in VMEM
            sem.at[s])
        cp.start()
        copies.append(cp)
    for cp in copies:                                  # all issued, then wait
        cp.wait()

    # ---- add position embeddings (block == whole sequence, no tiling) ------
    x = gather_buf[...] + pos_ref[...]                 # (S, H) float32

    # ---- LayerNorm over hidden dim: fused single-pass reductions -----------
    inv_h = 1.0 / x.shape[-1]
    s1 = jnp.sum(x, axis=-1, keepdims=True)            # independent reductions
    s2 = jnp.sum(x * x, axis=-1, keepdims=True)
    mu = s1 * inv_h
    var = s2 * inv_h - mu * mu
    y = (x - mu) * jax.lax.rsqrt(var + eps)

    gamma = ln_ref[0:1, :]                             # (1, H)
    beta = ln_ref[1:2, :]                              # (1, H)

    # dropout: identity in eval mode
    out_ref[...] = (y * gamma + beta).astype(out_ref.dtype)


# ------------------------------- wrapper ------------------------------------
def decoder_embeddings(x_ids, word_table, pos_table, gamma, beta):
    """x_ids: (B, S) int token ids.  Returns (B, S, H) float32 embeddings."""
    B, S = x_ids.shape
    V, H = word_table.shape

    ids_flat = x_ids.reshape(B * S).astype(jnp.int32)   # -> SMEM scalar prefetch
    pos_slice = pos_table[:S]                            # position ids = arange(S)
    ln = jnp.stack([gamma, beta], axis=0)                # (2, H) consolidated params

    kernel = functools.partial(embeddings_kernel, seq=S, eps=LN_EPS)

    out = pl.pallas_call(
        kernel,
        out_shape=jax.ShapeDtypeStruct((B * S, H), jnp.float32),
        grid_spec=pltpu.PrefetchScalarGridSpec(
            num_scalar_prefetch=1,                       # ids land in SMEM
            grid=(B,),                                   # one sequence per step
            in_specs=[
                pl.BlockSpec(memory_space=pl.ANY),             # word table: HBM
                pl.BlockSpec((S, H), lambda b, ids: (0, 0)),   # pos slice (resident)
                pl.BlockSpec((2, H), lambda b, ids: (0, 0)),   # gamma/beta (resident)
            ],
            out_specs=pl.BlockSpec((S, H), lambda b, ids: (b, 0)),
            scratch_shapes=[
                pltpu.VMEM((S, H), word_table.dtype),    # gathered word rows
                pltpu.SemaphoreType.DMA((S,)),           # one sem per row DMA
            ],
        ),
        compiler_params=pltpu.CompilerParams(
            dimension_semantics=("parallel",)),          # megacore-splittable
    )(ids_flat, word_table, pos_slice, ln)

    return out.reshape(B, S, H)


# ------------------------- pure-JAX reference (validation) ------------------
def reference_forward(x_ids, word_table, pos_table, gamma, beta):
    B, S = x_ids.shape
    position_ids = jnp.arange(S)
    input_embeds = word_table[x_ids]                      # (B, S, H)
    position_embeds = pos_table[position_ids][None, :, :] # (1, S, H)
    e = input_embeds + position_embeds
    mu = jnp.mean(e, axis=-1, keepdims=True)
    var = jnp.mean((e - mu) ** 2, axis=-1, keepdims=True)
    return (e - mu) / jnp.sqrt(var + LN_EPS) * gamma + beta


# --------------------------------- main --------------------------------------
if __name__ == "__main__":
    key = jax.random.PRNGKey(0)
    k_word, k_pos, k_g, k_b, k_ids = jax.random.split(key, 5)

    word_table = jax.random.normal(k_word, (VOCAB_SIZE, HIDDEN_DIM), jnp.float32) * 0.1
    # padding_idx semantics: pad row is zero-initialized (forward is still a lookup)
    word_table = word_table.at[PAD_TOKEN_ID].set(0.0)
    pos_table = jax.random.normal(k_pos, (MAX_POS, HIDDEN_DIM), jnp.float32) * 0.1
    gamma = 1.0 + 0.1 * jax.random.normal(k_g, (HIDDEN_DIM,), jnp.float32)
    beta = 0.1 * jax.random.normal(k_b, (HIDDEN_DIM,), jnp.float32)

    x_ids = jax.random.randint(k_ids, (BATCH, SEQ), 0, VOCAB_SIZE, jnp.int32)
    x_ids = x_ids.at[0, -1].set(PAD_TOKEN_ID)   # exercise the pad row too

    out = decoder_embeddings(x_ids, word_table, pos_table, gamma, beta)
    out = jax.block_until_ready(out)

    ref = reference_forward(x_ids, word_table, pos_table, gamma, beta)
    assert out.shape == (BATCH, SEQ, HIDDEN_DIM)
    assert jnp.allclose(out, ref, atol=1e-4, rtol=1e-4), \
        float(jnp.max(jnp.abs(out - ref)))

    print("KERNEL_OK")
</pallas_src>

<mosaic_0001>
module attributes {stable_mosaic.version = 11 : i64} {
  func.func @embeddings_kernel(%arg0: i32, %arg1: memref<16xi32, #tpu.memory_space<smem>>, %arg2: memref<128x128xf32, #tpu.memory_space<any>>, %arg3: memref<8x128xf32, #tpu.memory_space<vmem>>, %arg4: memref<2x128xf32, #tpu.memory_space<vmem>>, %arg5: memref<8x128xf32, #tpu.memory_space<vmem>>, %arg6: memref<8x128xf32, #tpu.memory_space<vmem>>, %arg7: memref<8x!tpu.dma_semaphore, #tpu.memory_space<semaphore_mem>>) attributes {dimension_semantics = [#tpu.dimension_semantics<parallel>], iteration_bounds = array<i64: 2>, scalar_prefetch = 1 : i64, scratch_operands = 2 : i64, tpu.core_type = #tpu.core_type<tc>, window_params = [{}, {pipeline_mode = #tpu.pipeline_mode<synchronous>, transform_indices = @transform_1, window_bounds = array<i64: 8, 128>}, {pipeline_mode = #tpu.pipeline_mode<synchronous>, transform_indices = @transform_2, window_bounds = array<i64: 2, 128>}, {transform_indices = @transform_3, window_bounds = array<i64: 8, 128>}]} {
    %c8_i32 = arith.constant 8 : i32
    %0 = arith.muli %arg0, %c8_i32 : i32
    %c0_i32 = arith.constant 0 : i32
    %1 = arith.addi %0, %c0_i32 : i32
    %2 = arith.index_cast %1 : i32 to index
    %3 = memref.load %arg1[%2] : memref<16xi32, #tpu.memory_space<smem>>
    %c0_i32_0 = arith.constant 0 : i32
    %c0_i32_1 = arith.constant 0 : i32
    %4 = tpu.memref_slice %arg2[%3, %c0_i32_1] : memref<128x128xf32, #tpu.memory_space<any>> -> memref<1x128xf32, #tpu.memory_space<any>>
    %c0_i32_2 = arith.constant 0 : i32
    %c0_i32_3 = arith.constant 0 : i32
    %5 = tpu.memref_slice %arg6[%c0_i32_2, %c0_i32_3] : memref<8x128xf32, #tpu.memory_space<vmem>> -> memref<1x128xf32, #tpu.memory_space<vmem>>
    %6 = tpu.memref_slice %arg7[%c0_i32_0] : memref<8x!tpu.dma_semaphore, #tpu.memory_space<semaphore_mem>> -> memref<1x!tpu.dma_semaphore, #tpu.memory_space<semaphore_mem>>
    %7 = tpu.memref_squeeze %6 : memref<1x!tpu.dma_semaphore, #tpu.memory_space<semaphore_mem>> -> memref<!tpu.dma_semaphore, #tpu.memory_space<semaphore_mem>>
    tpu.enqueue_dma source(%4 : memref<1x128xf32, #tpu.memory_space<any>>) target(%5 : memref<1x128xf32, #tpu.memory_space<vmem>>) target_semaphore(%7 : memref<!tpu.dma_semaphore, #tpu.memory_space<semaphore_mem>>)
    %c8_i32_4 = arith.constant 8 : i32
    %8 = arith.muli %arg0, %c8_i32_4 : i32
    %c1_i32 = arith.constant 1 : i32
    %9 = arith.addi %8, %c1_i32 : i32
    %10 = arith.index_cast %9 : i32 to index
    %11 = memref.load %arg1[%10] : memref<16xi32, #tpu.memory_space<smem>>
    %c1_i32_5 = arith.constant 1 : i32
    %c0_i32_6 = arith.constant 0 : i32
    %12 = tpu.memref_slice %arg2[%11, %c0_i32_6] : memref<128x128xf32, #tpu.memory_space<any>> -> memref<1x128xf32, #tpu.memory_space<any>>
    %c1_i32_7 = arith.constant 1 : i32
    %c0_i32_8 = arith.constant 0 : i32
    %13 = tpu.memref_slice %arg6[%c1_i32_7, %c0_i32_8] : memref<8x128xf32, #tpu.memory_space<vmem>> -> memref<1x128xf32, #tpu.memory_space<vmem>>
    %14 = tpu.memref_slice %arg7[%c1_i32_5] : memref<8x!tpu.dma_semaphore, #tpu.memory_space<semaphore_mem>> -> memref<1x!tpu.dma_semaphore, #tpu.memory_space<semaphore_mem>>
    %15 = tpu.memref_squeeze %14 : memref<1x!tpu.dma_semaphore, #tpu.memory_space<semaphore_mem>> -> memref<!tpu.dma_semaphore, #tpu.memory_space<semaphore_mem>>
    tpu.enqueue_dma source(%12 : memref<1x128xf32, #tpu.memory_space<any>>) target(%13 : memref<1x128xf32, #tpu.memory_space<vmem>>) target_semaphore(%15 : memref<!tpu.dma_semaphore, #tpu.memory_space<semaphore_mem>>)
    %c8_i32_9 = arith.constant 8 : i32
    %16 = arith.muli %arg0, %c8_i32_9 : i32
    %c2_i32 = arith.constant 2 : i32
    %17 = arith.addi %16, %c2_i32 : i32
    %18 = arith.index_cast %17 : i32 to index
    %19 = memref.load %arg1[%18] : memref<16xi32, #tpu.memory_space<smem>>
    %c2_i32_10 = arith.constant 2 : i32
    %c0_i32_11 = arith.constant 0 : i32
    %20 = tpu.memref_slice %arg2[%19, %c0_i32_11] : memref<128x128xf32, #tpu.memory_space<any>> -> memref<1x128xf32, #tpu.memory_space<any>>
    %c2_i32_12 = arith.constant 2 : i32
    %c0_i32_13 = arith.constant 0 : i32
    %21 = tpu.memref_slice %arg6[%c2_i32_12, %c0_i32_13] : memref<8x128xf32, #tpu.memory_space<vmem>> -> memref<1x128xf32, #tpu.memory_space<vmem>>
    %22 = tpu.memref_slice %arg7[%c2_i32_10] : memref<8x!tpu.dma_semaphore, #tpu.memory_space<semaphore_mem>> -> memref<1x!tpu.dma_semaphore, #tpu.memory_space<semaphore_mem>>
    %23 = tpu.memref_squeeze %22 : memref<1x!tpu.dma_semaphore, #tpu.memory_space<semaphore_mem>> -> memref<!tpu.dma_semaphore, #tpu.memory_space<semaphore_mem>>
    tpu.enqueue_dma source(%20 : memref<1x128xf32, #tpu.memory_space<any>>) target(%21 : memref<1x128xf32, #tpu.memory_space<vmem>>) target_semaphore(%23 : memref<!tpu.dma_semaphore, #tpu.memory_space<semaphore_mem>>)
    %c8_i32_14 = arith.constant 8 : i32
    %24 = arith.muli %arg0, %c8_i32_14 : i32
    %c3_i32 = arith.constant 3 : i32
    %25 = arith.addi %24, %c3_i32 : i32
    %26 = arith.index_cast %25 : i32 to index
    %27 = memref.load %arg1[%26] : memref<16xi32, #tpu.memory_space<smem>>
    %c3_i32_15 = arith.constant 3 : i32
    %c0_i32_16 = arith.constant 0 : i32
    %28 = tpu.memref_slice %arg2[%27, %c0_i32_16] : memref<128x128xf32, #tpu.memory_space<any>> -> memref<1x128xf32, #tpu.memory_space<any>>
    %c3_i32_17 = arith.constant 3 : i32
    %c0_i32_18 = arith.constant 0 : i32
    %29 = tpu.memref_slice %arg6[%c3_i32_17, %c0_i32_18] : memref<8x128xf32, #tpu.memory_space<vmem>> -> memref<1x128xf32, #tpu.memory_space<vmem>>
    %30 = tpu.memref_slice %arg7[%c3_i32_15] : memref<8x!tpu.dma_semaphore, #tpu.memory_space<semaphore_mem>> -> memref<1x!tpu.dma_semaphore, #tpu.memory_space<semaphore_mem>>
    %31 = tpu.memref_squeeze %30 : memref<1x!tpu.dma_semaphore, #tpu.memory_space<semaphore_mem>> -> memref<!tpu.dma_semaphore, #tpu.memory_space<semaphore_mem>>
    tpu.enqueue_dma source(%28 : memref<1x128xf32, #tpu.memory_space<any>>) target(%29 : memref<1x128xf32, #tpu.memory_space<vmem>>) target_semaphore(%31 : memref<!tpu.dma_semaphore, #tpu.memory_space<semaphore_mem>>)
    %c8_i32_19 = arith.constant 8 : i32
    %32 = arith.muli %arg0, %c8_i32_19 : i32
    %c4_i32 = arith.constant 4 : i32
    %33 = arith.addi %32, %c4_i32 : i32
    %34 = arith.index_cast %33 : i32 to index
    %35 = memref.load %arg1[%34] : memref<16xi32, #tpu.memory_space<smem>>
    %c4_i32_20 = arith.constant 4 : i32
    %c0_i32_21 = arith.constant 0 : i32
    %36 = tpu.memref_slice %arg2[%35, %c0_i32_21] : memref<128x128xf32, #tpu.memory_space<any>> -> memref<1x128xf32, #tpu.memory_space<any>>
    %c4_i32_22 = arith.constant 4 : i32
    %c0_i32_23 = arith.constant 0 : i32
    %37 = tpu.memref_slice %arg6[%c4_i32_22, %c0_i32_23] : memref<8x128xf32, #tpu.memory_space<vmem>> -> memref<1x128xf32, #tpu.memory_space<vmem>>
    %38 = tpu.memref_slice %arg7[%c4_i32_20] : memref<8x!tpu.dma_semaphore, #tpu.memory_space<semaphore_mem>> -> memref<1x!tpu.dma_semaphore, #tpu.memory_space<semaphore_mem>>
    %39 = tpu.memref_squeeze %38 : memref<1x!tpu.dma_semaphore, #tpu.memory_space<semaphore_mem>> -> memref<!tpu.dma_semaphore, #tpu.memory_space<semaphore_mem>>
    tpu.enqueue_dma source(%36 : memref<1x128xf32, #tpu.memory_space<any>>) target(%37 : memref<1x128xf32, #tpu.memory_space<vmem>>) target_semaphore(%39 : memref<!tpu.dma_semaphore, #tpu.memory_space<semaphore_mem>>)
    %c8_i32_24 = arith.constant 8 : i32
    %40 = arith.muli %arg0, %c8_i32_24 : i32
    %c5_i32 = arith.constant 5 : i32
    %41 = arith.addi %40, %c5_i32 : i32
    %42 = arith.index_cast %41 : i32 to index
    %43 = memref.load %arg1[%42] : memref<16xi32, #tpu.memory_space<smem>>
    %c5_i32_25 = arith.constant 5 : i32
    %c0_i32_26 = arith.constant 0 : i32
    %44 = tpu.memref_slice %arg2[%43, %c0_i32_26] : memref<128x128xf32, #tpu.memory_space<any>> -> memref<1x128xf32, #tpu.memory_space<any>>
    %c5_i32_27 = arith.constant 5 : i32
    %c0_i32_28 = arith.constant 0 : i32
    %45 = tpu.memref_slice %arg6[%c5_i32_27, %c0_i32_28] : memref<8x128xf32, #tpu.memory_space<vmem>> -> memref<1x128xf32, #tpu.memory_space<vmem>>
    %46 = tpu.memref_slice %arg7[%c5_i32_25] : memref<8x!tpu.dma_semaphore, #tpu.memory_space<semaphore_mem>> -> memref<1x!tpu.dma_semaphore, #tpu.memory_space<semaphore_mem>>
    %47 = tpu.memref_squeeze %46 : memref<1x!tpu.dma_semaphore, #tpu.memory_space<semaphore_mem>> -> memref<!tpu.dma_semaphore, #tpu.memory_space<semaphore_mem>>
    tpu.enqueue_dma source(%44 : memref<1x128xf32, #tpu.memory_space<any>>) target(%45 : memref<1x128xf32, #tpu.memory_space<vmem>>) target_semaphore(%47 : memref<!tpu.dma_semaphore, #tpu.memory_space<semaphore_mem>>)
    %c8_i32_29 = arith.constant 8 : i32
    %48 = arith.muli %arg0, %c8_i32_29 : i32
    %c6_i32 = arith.constant 6 : i32
    %49 = arith.addi %48, %c6_i32 : i32
    %50 = arith.index_cast %49 : i32 to index
    %51 = memref.load %arg1[%50] : memref<16xi32, #tpu.memory_space<smem>>
    %c6_i32_30 = arith.constant 6 : i32
    %c0_i32_31 = arith.constant 0 : i32
    %52 = tpu.memref_slice %arg2[%51, %c0_i32_31] : memref<128x128xf32, #tpu.memory_space<any>> -> memref<1x128xf32, #tpu.memory_space<any>>
    %c6_i32_32 = arith.constant 6 : i32
    %c0_i32_33 = arith.constant 0 : i32
    %53 = tpu.memref_slice %arg6[%c6_i32_32, %c0_i32_33] : memref<8x128xf32, #tpu.memory_space<vmem>> -> memref<1x128xf32, #tpu.memory_space<vmem>>
    %54 = tpu.memref_slice %arg7[%c6_i32_30] : memref<8x!tpu.dma_semaphore, #tpu.memory_space<semaphore_mem>> -> memref<1x!tpu.dma_semaphore, #tpu.memory_space<semaphore_mem>>
    %55 = tpu.memref_squeeze %54 : memref<1x!tpu.dma_semaphore, #tpu.memory_space<semaphore_mem>> -> memref<!tpu.dma_semaphore, #tpu.memory_space<semaphore_mem>>
    tpu.enqueue_dma source(%52 : memref<1x128xf32, #tpu.memory_space<any>>) target(%53 : memref<1x128xf32, #tpu.memory_space<vmem>>) target_semaphore(%55 : memref<!tpu.dma_semaphore, #tpu.memory_space<semaphore_mem>>)
    %c8_i32_34 = arith.constant 8 : i32
    %56 = arith.muli %arg0, %c8_i32_34 : i32
    %c7_i32 = arith.constant 7 : i32
    %57 = arith.addi %56, %c7_i32 : i32
    %58 = arith.index_cast %57 : i32 to index
    %59 = memref.load %arg1[%58] : memref<16xi32, #tpu.memory_space<smem>>
    %c7_i32_35 = arith.constant 7 : i32
    %c0_i32_36 = arith.constant 0 : i32
    %60 = tpu.memref_slice %arg2[%59, %c0_i32_36] : memref<128x128xf32, #tpu.memory_space<any>> -> memref<1x128xf32, #tpu.memory_space<any>>
    %c7_i32_37 = arith.constant 7 : i32
    %c0_i32_38 = arith.constant 0 : i32
    %61 = tpu.memref_slice %arg6[%c7_i32_37, %c0_i32_38] : memref<8x128xf32, #tpu.memory_space<vmem>> -> memref<1x128xf32, #tpu.memory_space<vmem>>
    %62 = tpu.memref_slice %arg7[%c7_i32_35] : memref<8x!tpu.dma_semaphore, #tpu.memory_space<semaphore_mem>> -> memref<1x!tpu.dma_semaphore, #tpu.memory_space<semaphore_mem>>
    %63 = tpu.memref_squeeze %62 : memref<1x!tpu.dma_semaphore, #tpu.memory_space<semaphore_mem>> -> memref<!tpu.dma_semaphore, #tpu.memory_space<semaphore_mem>>
    tpu.enqueue_dma source(%60 : memref<1x128xf32, #tpu.memory_space<any>>) target(%61 : memref<1x128xf32, #tpu.memory_space<vmem>>) target_semaphore(%63 : memref<!tpu.dma_semaphore, #tpu.memory_space<semaphore_mem>>)
    %c0_i32_39 = arith.constant 0 : i32
    %c0_i32_40 = arith.constant 0 : i32
    %64 = tpu.memref_slice %arg2[%3, %c0_i32_40] : memref<128x128xf32, #tpu.memory_space<any>> -> memref<1x128xf32, #tpu.memory_space<any>>
    %c0_i32_41 = arith.constant 0 : i32
    %c0_i32_42 = arith.constant 0 : i32
    %65 = tpu.memref_slice %arg6[%c0_i32_41, %c0_i32_42] : memref<8x128xf32, #tpu.memory_space<vmem>> -> memref<1x128xf32, #tpu.memory_space<vmem>>
    %66 = tpu.memref_slice %arg7[%c0_i32_39] : memref<8x!tpu.dma_semaphore, #tpu.memory_space<semaphore_mem>> -> memref<1x!tpu.dma_semaphore, #tpu.memory_space<semaphore_mem>>
    %67 = tpu.memref_squeeze %66 : memref<1x!tpu.dma_semaphore, #tpu.memory_space<semaphore_mem>> -> memref<!tpu.dma_semaphore, #tpu.memory_space<semaphore_mem>>
    tpu.wait_dma2 semaphore(%67 : memref<!tpu.dma_semaphore, #tpu.memory_space<semaphore_mem>>) src(%64 : memref<1x128xf32, #tpu.memory_space<any>>) dst(%65 : memref<1x128xf32, #tpu.memory_space<vmem>>)
    %c1_i32_43 = arith.constant 1 : i32
    %c0_i32_44 = arith.constant 0 : i32
    %68 = tpu.memref_slice %arg2[%11, %c0_i32_44] : memref<128x128xf32, #tpu.memory_space<any>> -> memref<1x128xf32, #tpu.memory_space<any>>
    %c1_i32_45 = arith.constant 1 : i32
    %c0_i32_46 = arith.constant 0 : i32
    %69 = tpu.memref_slice %arg6[%c1_i32_45, %c0_i32_46] : memref<8x128xf32, #tpu.memory_space<vmem>> -> memref<1x128xf32, #tpu.memory_space<vmem>>
    %70 = tpu.memref_slice %arg7[%c1_i32_43] : memref<8x!tpu.dma_semaphore, #tpu.memory_space<semaphore_mem>> -> memref<1x!tpu.dma_semaphore, #tpu.memory_space<semaphore_mem>>
    %71 = tpu.memref_squeeze %70 : memref<1x!tpu.dma_semaphore, #tpu.memory_space<semaphore_mem>> -> memref<!tpu.dma_semaphore, #tpu.memory_space<semaphore_mem>>
    tpu.wait_dma2 semaphore(%71 : memref<!tpu.dma_semaphore, #tpu.memory_space<semaphore_mem>>) src(%68 : memref<1x128xf32, #tpu.memory_space<any>>) dst(%69 : memref<1x128xf32, #tpu.memory_space<vmem>>)
    %c2_i32_47 = arith.constant 2 : i32
    %c0_i32_48 = arith.constant 0 : i32
    %72 = tpu.memref_slice %arg2[%19, %c0_i32_48] : memref<128x128xf32, #tpu.memory_space<any>> -> memref<1x128xf32, #tpu.memory_space<any>>
    %c2_i32_49 = arith.constant 2 : i32
    %c0_i32_50 = arith.constant 0 : i32
    %73 = tpu.memref_slice %arg6[%c2_i32_49, %c0_i32_50] : memref<8x128xf32, #tpu.memory_space<vmem>> -> memref<1x128xf32, #tpu.memory_space<vmem>>
    %74 = tpu.memref_slice %arg7[%c2_i32_47] : memref<8x!tpu.dma_semaphore, #tpu.memory_space<semaphore_mem>> -> memref<1x!tpu.dma_semaphore, #tpu.memory_space<semaphore_mem>>
    %75 = tpu.memref_squeeze %74 : memref<1x!tpu.dma_semaphore, #tpu.memory_space<semaphore_mem>> -> memref<!tpu.dma_semaphore, #tpu.memory_space<semaphore_mem>>
    tpu.wait_dma2 semaphore(%75 : memref<!tpu.dma_semaphore, #tpu.memory_space<semaphore_mem>>) src(%72 : memref<1x128xf32, #tpu.memory_space<any>>) dst(%73 : memref<1x128xf32, #tpu.memory_space<vmem>>)
    %c3_i32_51 = arith.constant 3 : i32
    %c0_i32_52 = arith.constant 0 : i32
    %76 = tpu.memref_slice %arg2[%27, %c0_i32_52] : memref<128x128xf32, #tpu.memory_space<any>> -> memref<1x128xf32, #tpu.memory_space<any>>
    %c3_i32_53 = arith.constant 3 : i32
    %c0_i32_54 = arith.constant 0 : i32
    %77 = tpu.memref_slice %arg6[%c3_i32_53, %c0_i32_54] : memref<8x128xf32, #tpu.memory_space<vmem>> -> memref<1x128xf32, #tpu.memory_space<vmem>>
    %78 = tpu.memref_slice %arg7[%c3_i32_51] : memref<8x!tpu.dma_semaphore, #tpu.memory_space<semaphore_mem>> -> memref<1x!tpu.dma_semaphore, #tpu.memory_space<semaphore_mem>>
    %79 = tpu.memref_squeeze %78 : memref<1x!tpu.dma_semaphore, #tpu.memory_space<semaphore_mem>> -> memref<!tpu.dma_semaphore, #tpu.memory_space<semaphore_mem>>
    tpu.wait_dma2 semaphore(%79 : memref<!tpu.dma_semaphore, #tpu.memory_space<semaphore_mem>>) src(%76 : memref<1x128xf32, #tpu.memory_space<any>>) dst(%77 : memref<1x128xf32, #tpu.memory_space<vmem>>)
    %c4_i32_55 = arith.constant 4 : i32
    %c0_i32_56 = arith.constant 0 : i32
    %80 = tpu.memref_slice %arg2[%35, %c0_i32_56] : memref<128x128xf32, #tpu.memory_space<any>> -> memref<1x128xf32, #tpu.memory_space<any>>
    %c4_i32_57 = arith.constant 4 : i32
    %c0_i32_58 = arith.constant 0 : i32
    %81 = tpu.memref_slice %arg6[%c4_i32_57, %c0_i32_58] : memref<8x128xf32, #tpu.memory_space<vmem>> -> memref<1x128xf32, #tpu.memory_space<vmem>>
    %82 = tpu.memref_slice %arg7[%c4_i32_55] : memref<8x!tpu.dma_semaphore, #tpu.memory_space<semaphore_mem>> -> memref<1x!tpu.dma_semaphore, #tpu.memory_space<semaphore_mem>>
    %83 = tpu.memref_squeeze %82 : memref<1x!tpu.dma_semaphore, #tpu.memory_space<semaphore_mem>> -> memref<!tpu.dma_semaphore, #tpu.memory_space<semaphore_mem>>
    tpu.wait_dma2 semaphore(%83 : memref<!tpu.dma_semaphore, #tpu.memory_space<semaphore_mem>>) src(%80 : memref<1x128xf32, #tpu.memory_space<any>>) dst(%81 : memref<1x128xf32, #tpu.memory_space<vmem>>)
    %c5_i32_59 = arith.constant 5 : i32
    %c0_i32_60 = arith.constant 0 : i32
    %84 = tpu.memref_slice %arg2[%43, %c0_i32_60] : memref<128x128xf32, #tpu.memory_space<any>> -> memref<1x128xf32, #tpu.memory_space<any>>
    %c5_i32_61 = arith.constant 5 : i32
    %c0_i32_62 = arith.constant 0 : i32
    %85 = tpu.memref_slice %arg6[%c5_i32_61, %c0_i32_62] : memref<8x128xf32, #tpu.memory_space<vmem>> -> memref<1x128xf32, #tpu.memory_space<vmem>>
    %86 = tpu.memref_slice %arg7[%c5_i32_59] : memref<8x!tpu.dma_semaphore, #tpu.memory_space<semaphore_mem>> -> memref<1x!tpu.dma_semaphore, #tpu.memory_space<semaphore_mem>>
    %87 = tpu.memref_squeeze %86 : memref<1x!tpu.dma_semaphore, #tpu.memory_space<semaphore_mem>> -> memref<!tpu.dma_semaphore, #tpu.memory_space<semaphore_mem>>
    tpu.wait_dma2 semaphore(%87 : memref<!tpu.dma_semaphore, #tpu.memory_space<semaphore_mem>>) src(%84 : memref<1x128xf32, #tpu.memory_space<any>>) dst(%85 : memref<1x128xf32, #tpu.memory_space<vmem>>)
    %c6_i32_63 = arith.constant 6 : i32
    %c0_i32_64 = arith.constant 0 : i32
    %88 = tpu.memref_slice %arg2[%51, %c0_i32_64] : memref<128x128xf32, #tpu.memory_space<any>> -> memref<1x128xf32, #tpu.memory_space<any>>
    %c6_i32_65 = arith.constant 6 : i32
    %c0_i32_66 = arith.constant 0 : i32
    %89 = tpu.memref_slice %arg6[%c6_i32_65, %c0_i32_66] : memref<8x128xf32, #tpu.memory_space<vmem>> -> memref<1x128xf32, #tpu.memory_space<vmem>>
    %90 = tpu.memref_slice %arg7[%c6_i32_63] : memref<8x!tpu.dma_semaphore, #tpu.memory_space<semaphore_mem>> -> memref<1x!tpu.dma_semaphore, #tpu.memory_space<semaphore_mem>>
    %91 = tpu.memref_squeeze %90 : memref<1x!tpu.dma_semaphore, #tpu.memory_space<semaphore_mem>> -> memref<!tpu.dma_semaphore, #tpu.memory_space<semaphore_mem>>
    tpu.wait_dma2 semaphore(%91 : memref<!tpu.dma_semaphore, #tpu.memory_space<semaphore_mem>>) src(%88 : memref<1x128xf32, #tpu.memory_space<any>>) dst(%89 : memref<1x128xf32, #tpu.memory_space<vmem>>)
    %c7_i32_67 = arith.constant 7 : i32
    %c0_i32_68 = arith.constant 0 : i32
    %92 = tpu.memref_slice %arg2[%59, %c0_i32_68] : memref<128x128xf32, #tpu.memory_space<any>> -> memref<1x128xf32, #tpu.memory_space<any>>
    %c7_i32_69 = arith.constant 7 : i32
    %c0_i32_70 = arith.constant 0 : i32
    %93 = tpu.memref_slice %arg6[%c7_i32_69, %c0_i32_70] : memref<8x128xf32, #tpu.memory_space<vmem>> -> memref<1x128xf32, #tpu.memory_space<vmem>>
    %94 = tpu.memref_slice %arg7[%c7_i32_67] : memref<8x!tpu.dma_semaphore, #tpu.memory_space<semaphore_mem>> -> memref<1x!tpu.dma_semaphore, #tpu.memory_space<semaphore_mem>>
    %95 = tpu.memref_squeeze %94 : memref<1x!tpu.dma_semaphore, #tpu.memory_space<semaphore_mem>> -> memref<!tpu.dma_semaphore, #tpu.memory_space<semaphore_mem>>
    tpu.wait_dma2 semaphore(%95 : memref<!tpu.dma_semaphore, #tpu.memory_space<semaphore_mem>>) src(%92 : memref<1x128xf32, #tpu.memory_space<any>>) dst(%93 : memref<1x128xf32, #tpu.memory_space<vmem>>)
    %c0 = arith.constant 0 : index
    %c0_71 = arith.constant 0 : index
    %96 = vector.load %arg6[%c0, %c0_71] : memref<8x128xf32, #tpu.memory_space<vmem>>, vector<8x128xf32>
    %c0_72 = arith.constant 0 : index
    %c0_73 = arith.constant 0 : index
    %97 = vector.load %arg3[%c0_72, %c0_73] : memref<8x128xf32, #tpu.memory_space<vmem>>, vector<8x128xf32>
    %98 = arith.addf %96, %97 : vector<8x128xf32>
    %cst = arith.constant dense<0.000000e+00> : vector<8xf32>
    %99 = vector.multi_reduction <add>, %98, %cst [1] : vector<8x128xf32> to vector<8xf32>
    %100 = vector.shape_cast %99 : vector<8xf32> to vector<8x1xf32>
    %101 = arith.mulf %98, %98 : vector<8x128xf32>
    %cst_74 = arith.constant dense<0.000000e+00> : vector<8xf32>
    %102 = vector.multi_reduction <add>, %101, %cst_74 [1] : vector<8x128xf32> to vector<8xf32>
    %103 = vector.shape_cast %102 : vector<8xf32> to vector<8x1xf32>
    %cst_75 = arith.constant 7.812500e-03 : f32
    %104 = vector.broadcast %cst_75 : f32 to vector<8x1xf32>
    %105 = arith.mulf %100, %104 : vector<8x1xf32>
    %cst_76 = arith.constant 7.812500e-03 : f32
    %106 = vector.broadcast %cst_76 : f32 to vector<8x1xf32>
    %107 = arith.mulf %103, %106 : vector<8x1xf32>
    %108 = arith.mulf %105, %105 : vector<8x1xf32>
    %109 = arith.subf %107, %108 : vector<8x1xf32>
    %110 = vector.broadcast %105 : vector<8x1xf32> to vector<8x128xf32>
    %111 = arith.subf %98, %110 : vector<8x128xf32>
    %cst_77 = arith.constant 9.99999974E-6 : f32
    %112 = vector.broadcast %cst_77 : f32 to vector<8x1xf32>
    %113 = arith.addf %109, %112 : vector<8x1xf32>
    %114 = math.rsqrt %113 : vector<8x1xf32>
    %115 = vector.broadcast %114 : vector<8x1xf32> to vector<8x128xf32>
    %116 = arith.mulf %111, %115 : vector<8x128xf32>
    %c0_78 = arith.constant 0 : index
    %c0_79 = arith.constant 0 : index
    %117 = vector.load %arg4[%c0_78, %c0_79] : memref<2x128xf32, #tpu.memory_space<vmem>>, vector<1x128xf32>
    %c1 = arith.constant 1 : index
    %c0_80 = arith.constant 0 : index
    %118 = vector.load %arg4[%c1, %c0_80] : memref<2x128xf32, #tpu.memory_space<vmem>>, vector<1x128xf32>
    %119 = vector.broadcast %117 : vector<1x128xf32> to vector<8x128xf32>
    %120 = arith.mulf %116, %119 : vector<8x128xf32>
    %121 = vector.broadcast %118 : vector<1x128xf32> to vector<8x128xf32>
    %122 = arith.addf %120, %121 : vector<8x128xf32>
    %c0_81 = arith.constant 0 : index
    %c0_82 = arith.constant 0 : index
    %123 = vector.load %arg5[%c0_81, %c0_82] : memref<8x128xf32, #tpu.memory_space<vmem>>, vector<8x128xf32>
    tpu.vector_store %arg5[%c0_81, %c0_82], %122 {strides = array<i32>} : memref<8x128xf32, #tpu.memory_space<vmem>>, vector<8x128xf32>,
    return
  }
  func.func @transform_1(%arg0: i32, %arg1: memref<16xi32, #tpu.memory_space<smem>>) -> (i32, i32) {
    %c0_i32 = arith.constant 0 : i32
    %c0_i32_0 = arith.constant 0 : i32
    %c0_i32_1 = arith.constant 0 : i32
    return %c0_i32, %c0_i32_0 : i32, i32
  }
  func.func @transform_2(%arg0: i32, %arg1: memref<16xi32, #tpu.memory_space<smem>>) -> (i32, i32) {
    %c0_i32 = arith.constant 0 : i32
    %c0_i32_0 = arith.constant 0 : i32
    %c0_i32_1 = arith.constant 0 : i32
    return %c0_i32, %c0_i32_0 : i32, i32
  }
  func.func @transform_3(%arg0: i32, %arg1: memref<16xi32, #tpu.memory_space<smem>>) -> (i32, i32) {
    %c0_i32 = arith.constant 0 : i32
    %c0_i32_0 = arith.constant 0 : i32
    return %arg0, %c0_i32 : i32, i32
  }
}

</mosaic_0001>

<llo_original>
// kernel: tpu_custom_call.1
$region0: #{tpu_custom_call.1}
  #allocation0 [shape = 'u32[]', space=smem, size = 0x4, offset = 0x4, fixed_abs, tag = 'smem constant byte address 0x4 - core index']
  #allocation1 [shape = 'u32[144,128]{1,0:T(1,128)}', space=vmem, size = 0x12000, scoped, tag = 'internal scratch']
  #allocation2 [shape = 'f32[8,128]{1,0:T(8,128)}', space=vmem, size = 0x1000, scoped, tag = 'scratch operand']
  #allocation3 [shape = 's32[8]{0}', space=sflag, size = 0x20, scoped, tag = 'scratch operand']
  #allocation4 [shape = 's32[1]{0}', space=sflag, size = 0x4, scoped, tag = 'scoped memory for tpu_custom_call.1']
  #allocation5 [shape = 'u8[512]{0}', space=smem, size = 0x200, scoped, tag = 'prefetched SMEM operand 0']
  #allocation10 [shape = 's32[]', space=sflag, size = 0x4, offset = 0, fixed_abs, tag = 'sflag constant byte address 0x0 - dummy sync flag']
  #allocation11 [shape = 's32[]', space=sflag, size = 0x4, offset = 0, fixed_abs, tag = 'sflag constant byte address 0x0 - dummy sync flag']
  #allocation12 [shape = 'u32[]', space=smem, size = 0x4, offset = 0x44, fixed_abs, tag = 'smem constant byte address 0x44 - assertion arg 0']
  #allocation13 [shape = 'u32[]', space=smem, size = 0x4, offset = 0x48, fixed_abs, tag = 'smem constant byte address 0x48 - assertion arg 1']
  #allocation14 [shape = 's32[]', space=sflag, size = 0x4, offset = 0, fixed_abs, tag = 'sflag constant byte address 0x0 - dummy sync flag']
  #allocation15 [shape = 's32[]', space=sflag, size = 0x4, offset = 0, fixed_abs, tag = 'sflag constant byte address 0x0 - dummy sync flag']
  #allocation16 [shape = 's32[]', space=sflag, size = 0x4, offset = 0, fixed_abs, tag = 'sflag constant byte address 0x0 - dummy sync flag']
  #allocation17 [shape = 's32[]', space=sflag, size = 0x4, offset = 0, fixed_abs, tag = 'sflag constant byte address 0x0 - dummy sync flag']
  #allocation18 [shape = 's32[]', space=sflag, size = 0x4, offset = 0, fixed_abs, tag = 'sflag constant byte address 0x0 - dummy sync flag']
  #allocation19 [shape = 's32[]', space=sflag, size = 0x4, offset = 0, fixed_abs, tag = 'sflag constant byte address 0x0 - dummy sync flag']
  #allocation20 [shape = 's32[]', space=sflag, size = 0x4, offset = 0, fixed_abs, tag = 'sflag constant byte address 0x0 - dummy sync flag']
  #allocation21 [shape = 's32[]', space=sflag, size = 0x4, offset = 0, fixed_abs, tag = 'sflag constant byte address 0x0 - dummy sync flag']
  #allocation22 [shape = 's32[]', space=sflag, size = 0x4, offset = 0, fixed_abs, tag = 'sflag constant byte address 0x0 - dummy sync flag']
  #allocation23 [shape = 's32[]', space=sflag, size = 0x4, offset = 0, fixed_abs, tag = 'sflag constant byte address 0x0 - dummy sync flag']
  #allocation24 [shape = 's32[]', space=sflag, size = 0x4, offset = 0, fixed_abs, tag = 'sflag constant byte address 0x0 - dummy sync flag']
  #allocation25 [shape = 's32[]', space=sflag, size = 0x4, offset = 0, fixed_abs, tag = 'sflag constant byte address 0x0 - dummy sync flag']
  #allocation26 [shape = 's32[]', space=sflag, size = 0x4, offset = 0, fixed_abs, tag = 'sflag constant byte address 0x0 - dummy sync flag']
  #allocation27 [shape = 's32[]', space=sflag, size = 0x4, offset = 0, fixed_abs, tag = 'sflag constant byte address 0x0 - dummy sync flag']
  %s0 = inlined_call_operand.hbm [shape: s32[16], index: 0, kind: input, shape index: {}]
  %s1 = inlined_call_operand.hbm [shape: f32[128,128], index: 1, kind: input, shape index: {}]
  %s2 = inlined_call_operand.hbm [shape: f32[8,128], index: 2, kind: input, shape index: {}]
  %s3 = inlined_call_operand.vmem [shape: f32[2,128], index: 3, kind: input, shape index: {}]
  %s4 = inlined_call_operand.hbm [shape: f32[16,128], index: 4, kind: output, shape index: {}]
  %s5 = sld [smem:[#allocation0]]
  $region77: #{tpu_custom_call.1} parent=0
    _
  %s7 = ssub.s32 1, %s5
  %s8 = scalar_select 0, %s7, %s5
  %10 = dma.hbm_to_smem %s0, 16, [#allocation5], [#allocation4]
  %11 = dma.done [#allocation4], 16
  %12 = sfence
  $region1: #{tpu_custom_call.1} parent=0
    #allocation6 [shape = 'u8[4096]{0}', space=vmem, size = 0x1000, scoped, tag = 'input window, operand 2, single buffered']
    #allocation7 [shape = 's32[2]{0}', space=sflag, size = 0x8, scoped, tag = 'scoped memory for tpu_custom_call.1']
    #allocation8 [shape = 's32[2]{0}', space=sflag, size = 0x8, scoped, tag = 'scoped memory for tpu_custom_call.1']
    #allocation9 [shape = 'u8[8192]{0}', space=vmem, size = 0x2000, scoped, tag = 'output window, operand 0']
    %13 = vsyncpa [#allocation7], 0
    %14 = vsyncpa [#allocation8], 0
    %s15 = scalar_lea.sflag [#allocation8], 1
    %16 = vsyncpa %s15, 0
    loop: start=0, step=1, limit=4
    $region2: #{tpu_custom_call.1} parent=1 // loop_pre_header
      _
    $region3: #{tpu_custom_call.1} parent=1 // loop_header
      %s18 = sphi 0, %s22
      %p19 = scmp.ge.s32.totalorder %s18, 4
      %s26 = sphi 0, %s26
      %s28 = sphi 0, %s26
      %s29 = sphi 0, %s28
      %s43 = sphi 0, %s29
      %s47 = sphi 0, %s47
      %s49 = sphi 0, %s47
      %s50 = sphi 0, %s49
      %s64 = sphi 0, %s50
      %s70 = sphi 0, %s72
      %s73 = sphi 0, %s70
      %s74 = sphi 0, %s73
      %s90 = sphi 0, %s74
    $region4: #{tpu_custom_call.1} parent=1 // loop_header_branch
      %21 = sbr.rel (%p19) target = $region8
    $region5: #{tpu_custom_call.1} parent=1 // loop_body
      %s23 = ssub.s32 %s18, 1
      %s24 = ssub.s32 %s18, 2
      %s25 = sadd.s32 %s18, 1
      %s27 = sadd.s32 %s26, 1
      %p30 = scmp.eq.s32.totalorder %s18, 1
      %p31 = scmp.ne.s32.totalorder %s26, %s28
      %p32 = scmp.eq.s32.totalorder %s18, 0
      %p33 = por %p31, %p32
      %p34 = scmp.ne.s32.totalorder %s26, %s28
      %p35 = scmp.eq.s32.totalorder %s23, 1
      %p36 = por %p34, %p35
      %p37 = scmp.ne.s32.totalorder %s28, %s29
      %p38 = scmp.eq.s32.totalorder %s23, 0
      %p39 = por %p37, %p38
      %p40 = scmp.ne.s32.totalorder %s28, %s29
      %p41 = scmp.eq.s32.totalorder %s24, 1
      %p42 = por %p40, %p41
      %p44 = scmp.ne.s32.totalorder %s29, %s43
      %p45 = scmp.eq.s32.totalorder %s24, 0
      %p46 = por %p44, %p45
      %s48 = sadd.s32 %s47, 1
      %p51 = scmp.eq.s32.totalorder %s18, 1
      %p52 = scmp.ne.s32.totalorder %s47, %s49
      %p53 = scmp.eq.s32.totalorder %s18, 0
      %p54 = por %p52, %p53
      %p55 = scmp.ne.s32.totalorder %s47, %s49
      %p56 = scmp.eq.s32.totalorder %s23, 1
      %p57 = por %p55, %p56
      %p58 = scmp.ne.s32.totalorder %s49, %s50
      %p59 = scmp.eq.s32.totalorder %s23, 0
      %p60 = por %p58, %p59
      %p61 = scmp.ne.s32.totalorder %s49, %s50
      %p62 = scmp.eq.s32.totalorder %s24, 1
      %p63 = por %p61, %p62
      %p65 = scmp.ne.s32.totalorder %s50, %s64
      %p66 = scmp.eq.s32.totalorder %s24, 0
      %p67 = por %p65, %p66
      %s68 = ssub.s32 %s18, %s25
      %p69 = scmp.eq.s32.totalorder %s68, 0
      %s71 = sadd.s32 %s70, 1
      %s72 = scalar_select %p69, %s70, %s71
      %p75 = pneg %p69
      %p76 = scmp.eq.s32.totalorder %s18, 1
      %p77 = por %p75, %p76
      %p78 = scmp.ne.s32.totalorder %s70, %s73
      %p79 = scmp.eq.s32.totalorder %s18, 0
      %p80 = por %p78, %p79
      %p81 = scmp.ne.s32.totalorder %s70, %s73
      %p82 = scmp.eq.s32.totalorder %s23, 1
      %p83 = por %p81, %p82
      %p84 = scmp.ne.s32.totalorder %s73, %s74
      %p85 = scmp.eq.s32.totalorder %s23, 0
      %p86 = por %p84, %p85
      %p87 = scmp.ne.s32.totalorder %s73, %s74
      %p88 = scmp.eq.s32.totalorder %s24, 1
      %p89 = por %p87, %p88
      %p91 = scmp.ne.s32.totalorder %s74, %s90
      %p92 = scmp.eq.s32.totalorder %s24, 0
      %p93 = por %p91, %p92
      %p94 = scmp.le.s32.totalorder 1, %s18
      %p95 = scmp.lt.s32.totalorder %s18, 3
      %p96 = pnand %p94, %p95
      %p97 = pneg %p96
      // Predicated region
      $region9: #{tpu_custom_call.1} parent=5 // pred_check
        _
      $region10: #{tpu_custom_call.1} parent=5 // pred_check_branch
        %99 = sbr.rel (%p96) target = $region12
      $region11: #{tpu_custom_call.1} parent=5 // pred_region
        %s100 = ssub.s32 %s18, 1
        // Predicated region
        $region13: #{tpu_custom_call.1} parent=11 // pred_check
          %p101 = pneg %p39
        $region14: #{tpu_custom_call.1} parent=11 // pred_check_branch
          %103 = sbr.rel (%p101) target = $region16
        $region15: #{tpu_custom_call.1} parent=11 // pred_region
          %s105 = ssub.s32 128, 128
          %106 = vsyncadd [#allocation7], %s105
          %s108 = sshll.u32 [#allocation6], 4
          %s109 = int_to_ptr.vmem [resolvable:$true] %s108
          %111 = dma.hbm_to_vmem [thread:$0]  %s2, 128, %s109, [#allocation7]
        $region16: #{tpu_custom_call.1} parent=11 // pred_fallthru
          _
        // Predicated region
        $region17: #{tpu_custom_call.1} parent=11 // pred_check
          %p112 = pneg %p60
        $region18: #{tpu_custom_call.1} parent=11 // pred_check_branch
          %114 = sbr.rel (%p112) target = $region20
        $region19: #{tpu_custom_call.1} parent=11 // pred_region
          _
        $region20: #{tpu_custom_call.1} parent=11 // pred_fallthru
          _
      $region12: #{tpu_custom_call.1} parent=5 // pred_fallthru
        _
      %p115 = scmp.lt.s32.totalorder %s18, 2
      // Predicated region
      $region21: #{tpu_custom_call.1} parent=5 // pred_check
        %p116 = pneg %p115
      $region22: #{tpu_custom_call.1} parent=5 // pred_check_branch
        %118 = sbr.rel (%p116) target = $region24
      $region23: #{tpu_custom_call.1} parent=5 // pred_region
        _
      $region24: #{tpu_custom_call.1} parent=5 // pred_fallthru
        _
      %p119 = scmp.le.s32.totalorder 1, %s18
      %p120 = scmp.lt.s32.totalorder %s18, 3
      %p121 = pnand %p119, %p120
      %p122 = pneg %p121
      // Predicated region
      $region25: #{tpu_custom_call.1} parent=5 // pred_check
        _
      $region26: #{tpu_custom_call.1} parent=5 // pred_check_branch
        %124 = sbr.rel (%p121) target = $region28
      $region27: #{tpu_custom_call.1} parent=5 // pred_region
        %s125 = ssub.s32 %s18, 1
        // Predicated region
        $region29: #{tpu_custom_call.1} parent=27 // pred_check
          %p126 = pneg %p39
        $region30: #{tpu_custom_call.1} parent=27 // pred_check_branch
          %128 = sbr.rel (%p126) target = $region32
        $region31: #{tpu_custom_call.1} parent=27 // pred_region
          %129 = dma.done [#allocation7], 128
        $region32: #{tpu_custom_call.1} parent=27 // pred_fallthru
          _
        %p130 = pneg %p39
        %p131 = pneg %p36
        %p132 = pneg %p60
        %p133 = pneg %p57
        %p134 = pneg %p86
        %p135 = pneg %p83
        %s136 = sand.u32 %s73, 1
        %s137 = scalar_lea.sflag [#allocation8], %s136
        %s138 = sand.u32 %s73, 1
        %s139 = smul.addr %s138, 8
        %s140 = scalar_lea.vmem [#allocation9], %s139
        %s141 = smul.u32 %s23, 8
        %s142 = sld [smem:[#allocation5 + %s141]]
        %s143 = smul.addr %s142, 16
        %s144 = scalar_lea.hbm %s1, %s143
        // Predicated region
        $region33: #{tpu_custom_call.1} parent=27 // pred_check
          _
        $region34: #{tpu_custom_call.1} parent=27 // pred_check_branch
          %146 = sbr.rel target = $region36
        $region35: #{tpu_custom_call.1} parent=27 // pred_region
          %147 = sst [smem:[#allocation12]] [#allocation11]
          %148 = sst [smem:[#allocation13]] [#allocation10]
        $region36: #{tpu_custom_call.1} parent=27 // pred_fallthru
          _
        %150 = shalt.err (0)
        %s152 = sshll.u32 [#allocation2], 4
        %s153 = int_to_ptr.vmem [resolvable:$true] %s152
        %155 = dma.hbm_to_vmem [thread:$0]  %s144, 16, %s153, [#allocation3]
        %s156 = sadd.s32 %s141, 1
        %s157 = sld [smem:[#allocation5 + %s156]]
        %s158 = smul.addr %s157, 16
        %s159 = scalar_lea.hbm %s1, %s158
        %s160 = scalar_lea.vmem [#allocation2], 1
        %s161 = scalar_lea.sflag [#allocation3], 1
        // Predicated region
        $region37: #{tpu_custom_call.1} parent=27 // pred_check
          _
        $region38: #{tpu_custom_call.1} parent=27 // pred_check_branch
          %163 = sbr.rel target = $region40
        $region39: #{tpu_custom_call.1} parent=27 // pred_region
          %164 = sst [smem:[#allocation12]] [#allocation15]
          %165 = sst [smem:[#allocation13]] [#allocation14]
        $region40: #{tpu_custom_call.1} parent=27 // pred_fallthru
          _
        %167 = shalt.err (0)
        %s169 = sshll.u32 %s160, 4
        %s170 = int_to_ptr.vmem [resolvable:$true] %s169
        %172 = dma.hbm_to_vmem [thread:$0]  %s159, 16, %s170, %s161
        %s173 = sadd.s32 %s141, 2
        %s174 = sld [smem:[#allocation5 + %s173]]
        %s175 = smul.addr %s174, 16
        %s176 = scalar_lea.hbm %s1, %s175
        %s177 = scalar_lea.vmem [#allocation2], 2
        %s178 = scalar_lea.sflag [#allocation3], 2
        // Predicated region
        $region41: #{tpu_custom_call.1} parent=27 // pred_check
          _
        $region42: #{tpu_custom_call.1} parent=27 // pred_check_branch
          %180 = sbr.rel target = $region44
        $region43: #{tpu_custom_call.1} parent=27 // pred_region
          %181 = sst [smem:[#allocation12]] [#allocation17]
          %182 = sst [smem:[#allocation13]] [#allocation16]
        $region44: #{tpu_custom_call.1} parent=27 // pred_fallthru
          _
        %184 = shalt.err (0)
        %s186 = sshll.u32 %s177, 4
        %s187 = int_to_ptr.vmem [resolvable:$true] %s186
        %189 = dma.hbm_to_vmem [thread:$0]  %s176, 16, %s187, %s178
        %s190 = sadd.s32 %s141, 3
        %s191 = sld [smem:[#allocation5 + %s190]]
        %s192 = smul.addr %s191, 16
        %s193 = scalar_lea.hbm %s1, %s192
        %s194 = scalar_lea.vmem [#allocation2], 3
        %s195 = scalar_lea.sflag [#allocation3], 3
        // Predicated region
        $region45: #{tpu_custom_call.1} parent=27 // pred_check
          _
        $region46: #{tpu_custom_call.1} parent=27 // pred_check_branch
          %197 = sbr.rel target = $region48
        $region47: #{tpu_custom_call.1} parent=27 // pred_region
          %198 = sst [smem:[#allocation12]] [#allocation19]
          %199 = sst [smem:[#allocation13]] [#allocation18]
        $region48: #{tpu_custom_call.1} parent=27 // pred_fallthru
          _
        %201 = shalt.err (0)
        %s203 = sshll.u32 %s194, 4
        %s204 = int_to_ptr.vmem [resolvable:$true] %s203
        %206 = dma.hbm_to_vmem [thread:$0]  %s193, 16, %s204, %s195
        %s207 = sadd.s32 %s141, 4
        %s208 = sld [smem:[#allocation5 + %s207]]
        %s209 = smul.addr %s208, 16
        %s210 = scalar_lea.hbm %s1, %s209
        %s211 = scalar_lea.vmem [#allocation2], 4
        %s212 = scalar_lea.sflag [#allocation3], 4
        // Predicated region
        $region49: #{tpu_custom_call.1} parent=27 // pred_check
          _
        $region50: #{tpu_custom_call.1} parent=27 // pred_check_branch
          %214 = sbr.rel target = $region52
        $region51: #{tpu_custom_call.1} parent=27 // pred_region
          %215 = sst [smem:[#allocation12]] [#allocation21]
          %216 = sst [smem:[#allocation13]] [#allocation20]
        $region52: #{tpu_custom_call.1} parent=27 // pred_fallthru
          _
        %218 = shalt.err (0)
        %s220 = sshll.u32 %s211, 4
        %s221 = int_to_ptr.vmem [resolvable:$true] %s220
        %223 = dma.hbm_to_vmem [thread:$0]  %s210, 16, %s221, %s212
        %s224 = sadd.s32 %s141, 5
        %s225 = sld [smem:[#allocation5 + %s224]]
        %s226 = smul.addr %s225, 16
        %s227 = scalar_lea.hbm %s1, %s226
        %s228 = scalar_lea.vmem [#allocation2], 5
        %s229 = scalar_lea.sflag [#allocation3], 5
        // Predicated region
        $region53: #{tpu_custom_call.1} parent=27 // pred_check
          _
        $region54: #{tpu_custom_call.1} parent=27 // pred_check_branch
          %231 = sbr.rel target = $region56
        $region55: #{tpu_custom_call.1} parent=27 // pred_region
          %232 = sst [smem:[#allocation12]] [#allocation23]
          %233 = sst [smem:[#allocation13]] [#allocation22]
        $region56: #{tpu_custom_call.1} parent=27 // pred_fallthru
          _
        %235 = shalt.err (0)
        %s237 = sshll.u32 %s228, 4
        %s238 = int_to_ptr.vmem [resolvable:$true] %s237
        %240 = dma.hbm_to_vmem [thread:$0]  %s227, 16, %s238, %s229
        %s241 = sadd.s32 %s141, 6
        %s242 = sld [smem:[#allocation5 + %s241]]
        %s243 = smul.addr %s242, 16
        %s244 = scalar_lea.hbm %s1, %s243
        %s245 = scalar_lea.vmem [#allocation2], 6
        %s246 = scalar_lea.sflag [#allocation3], 6
        // Predicated region
        $region57: #{tpu_custom_call.1} parent=27 // pred_check
          _
        $region58: #{tpu_custom_call.1} parent=27 // pred_check_branch
          %248 = sbr.rel target = $region60
        $region59: #{tpu_custom_call.1} parent=27 // pred_region
          %249 = sst [smem:[#allocation12]] [#allocation25]
          %250 = sst [smem:[#allocation13]] [#allocation24]
        $region60: #{tpu_custom_call.1} parent=27 // pred_fallthru
          _
        %252 = shalt.err (0)
        %s254 = sshll.u32 %s245, 4
        %s255 = int_to_ptr.vmem [resolvable:$true] %s254
        %257 = dma.hbm_to_vmem [thread:$0]  %s244, 16, %s255, %s246
        %s258 = sadd.s32 %s141, 7
        %s259 = sld [smem:[#allocation5 + %s258]]
        %s260 = smul.addr %s259, 16
        %s261 = scalar_lea.hbm %s1, %s260
        %s262 = scalar_lea.vmem [#allocation2], 7
        %s263 = scalar_lea.sflag [#allocation3], 7
        // Predicated region
        $region61: #{tpu_custom_call.1} parent=27 // pred_check
          _
        $region62: #{tpu_custom_call.1} parent=27 // pred_check_branch
          %265 = sbr.rel target = $region64
        $region63: #{tpu_custom_call.1} parent=27 // pred_region
          %266 = sst [smem:[#allocation12]] [#allocation27]
          %267 = sst [smem:[#allocation13]] [#allocation26]
        $region64: #{tpu_custom_call.1} parent=27 // pred_fallthru
          _
        %269 = shalt.err (0)
        %s271 = sshll.u32 %s262, 4
        %s272 = int_to_ptr.vmem [resolvable:$true] %s271
        %274 = dma.hbm_to_vmem [thread:$0]  %s261, 16, %s272, %s263
        %s275 = smul.u32 1, 1
        %s276 = sshll.u32 %s275, 4
        %277 = dma.done [#allocation3], %s276
        %s278 = sshll.u32 %s275, 4
        %279 = dma.done %s161, %s278
        %s280 = sshll.u32 %s275, 4
        %281 = dma.done %s178, %s280
        %s282 = sshll.u32 %s275, 4
        %283 = dma.done %s195, %s282
        %s284 = sshll.u32 %s275, 4
        %285 = dma.done %s212, %s284
        %s286 = sshll.u32 %s275, 4
        %287 = dma.done %s229, %s286
        %s288 = sshll.u32 %s275, 4
        %289 = dma.done %s246, %s288
        %s290 = sshll.u32 %s275, 4
        %291 = dma.done %s263, %s290
        %v292 = vld [vmem:[#allocation2] sm:$0xff]
        %v293 = vld [vmem:[#allocation6] sm:$0xff]
        %v294 = vadd.f32 %v292, %v293
        %295 = vadd.xlane.f32.xlu0 %v294
        %v296 = vpop.xlane.xlu0 %295
        %v297 = vmul.f32 %v294, %v294
        %298 = vadd.xlane.f32.xlu0 %v297
        %v299 = vpop.xlane.xlu0 %298
        %v300 = vmul.f32 %v296, 0.0078125
        %v301 = vmul.f32 %v299, 0.0078125
        %v302 = vmul.f32 %v300, %v300
        %v303 = vsub.f32 %v301, %v302
        %v304 = vsub.f32 %v294, %v300
        %v305 = vadd.f32 %v303, 1e-05
        %v306 = vrsqrt.pop %v305
        %v307 = vmul.f32 %v304, %v306
        %v308 = vld [vmem:[%s3] sm:$0x1]
        %v309 = vld [vmem:[%s3 + $0x1] sm:$0x1]
        %v310 = vlaneseq
        %v311 = vshrl.u32 %v310, 7
        %v312 = vsub.s32 0, %v311
        %v313 = vrot.slane %v308, %v312
        %v314 = vmul.f32 %v307, %v313
        %v315 = vlaneseq
        %v316 = vshrl.u32 %v315, 7
        %v317 = vsub.s32 0, %v316
        %v318 = vrot.slane %v309, %v317
        %v319 = vadd.f32 %v314, %v318
        %320 = vst [vmem:[%s140] sm:$0xff] %v319
        %s321 = sand.u32 %s73, 1
        %s322 = scalar_lea.sflag [#allocation8], %s321
        %s323 = sand.u32 %s73, 1
        %s324 = smul.addr %s323, 8
        %s325 = scalar_lea.vmem [#allocation9], %s324
        // Predicated region
        $region65: #{tpu_custom_call.1} parent=27 // pred_check
          %p326 = pneg %p83
        $region66: #{tpu_custom_call.1} parent=27 // pred_check_branch
          %328 = sbr.rel (%p326) target = $region68
        $region67: #{tpu_custom_call.1} parent=27 // pred_region
          %s330 = ssub.s32 128, 128
          %331 = vsyncadd %s322, %s330
          %s332 = smul.addr %s23, 128
          %s333 = scalar_lea.hbm %s4, %s332
          %s335 = sshll.u32 %s325, 4
          %s336 = int_to_ptr.vmem [resolvable:$true] %s335
          %338 = dma.vmem_to_hbm [thread:$0]  %s336, 128, %s333, %s322
        $region68: #{tpu_custom_call.1} parent=27 // pred_fallthru
          _
      $region28: #{tpu_custom_call.1} parent=5 // pred_fallthru
        _
      %p339 = scmp.le.s32.totalorder 2, %s18
      // Predicated region
      $region69: #{tpu_custom_call.1} parent=5 // pred_check
        %p340 = pneg %p339
      $region70: #{tpu_custom_call.1} parent=5 // pred_check_branch
        %342 = sbr.rel (%p340) target = $region72
      $region71: #{tpu_custom_call.1} parent=5 // pred_region
        %s343 = ssub.s32 %s18, 2
        // Predicated region
        $region73: #{tpu_custom_call.1} parent=71 // pred_check
          %p344 = pneg %p89
        $region74: #{tpu_custom_call.1} parent=71 // pred_check_branch
          %346 = sbr.rel (%p344) target = $region76
        $region75: #{tpu_custom_call.1} parent=71 // pred_region
          %s347 = sand.u32 %s74, 1
          %s348 = scalar_lea.sflag [#allocation8], %s347
          %s349 = sand.u32 %s74, 1
          %s350 = smul.addr %s349, 8
          %s351 = scalar_lea.vmem [#allocation9], %s350
          %352 = dma.done %s348, 128
        $region76: #{tpu_custom_call.1} parent=71 // pred_fallthru
          _
      $region72: #{tpu_custom_call.1} parent=5 // pred_fallthru
        _
    $region6: #{tpu_custom_call.1} parent=1 // loop_footer
      %s22 = sadd.s32 1, %s18
    $region7: #{tpu_custom_call.1} parent=1 // loop_footer_branch
      %17 = sbr.rel target = $region3
    $region8: #{tpu_custom_call.1} parent=1 // loop_exit
      _
    %353 = vsyncpa [#allocation7], 1
    %s354 = scalar_lea.sflag [#allocation7], 1
    %355 = vsyncpa %s354, 1
    %356 = vsyncpa [#allocation8], 1
    %s357 = scalar_lea.sflag [#allocation8], 1
    %358 = vsyncpa %s357, 1
  %359 = vsyncmov [#allocation3]
  %s360 = vpop.sfrf %359
  %p361 = scmp.eq.s32.totalorder %s360, 0
  %p362 = pneg %p361
  %364 = shalt.err (%p362)
  %s365 = scalar_lea.sflag [#allocation3], 1
  %366 = vsyncmov %s365
  %s367 = vpop.sfrf %366
  %p368 = scmp.eq.s32.totalorder %s367, 0
  %p369 = pneg %p368
  %371 = shalt.err (%p369)
  %s372 = scalar_lea.sflag [#allocation3], 2
  %373 = vsyncmov %s372
  %s374 = vpop.sfrf %373
  %p375 = scmp.eq.s32.totalorder %s374, 0
  %p376 = pneg %p375
  %378 = shalt.err (%p376)
  %s379 = scalar_lea.sflag [#allocation3], 3
  %380 = vsyncmov %s379
  %s381 = vpop.sfrf %380
  %p382 = scmp.eq.s32.totalorder %s381, 0
  %p383 = pneg %p382
  %385 = shalt.err (%p383)
  %s386 = scalar_lea.sflag [#allocation3], 4
  %387 = vsyncmov %s386
  %s388 = vpop.sfrf %387
  %p389 = scmp.eq.s32.totalorder %s388, 0
  %p390 = pneg %p389
  %392 = shalt.err (%p390)
  %s393 = scalar_lea.sflag [#allocation3], 5
  %394 = vsyncmov %s393
  %s395 = vpop.sfrf %394
  %p396 = scmp.eq.s32.totalorder %s395, 0
  %p397 = pneg %p396
  %399 = shalt.err (%p397)
  %s400 = scalar_lea.sflag [#allocation3], 6
  %401 = vsyncmov %s400
  %s402 = vpop.sfrf %401
  %p403 = scmp.eq.s32.totalorder %s402, 0
  %p404 = pneg %p403
  %406 = shalt.err (%p404)
  %s407 = scalar_lea.sflag [#allocation3], 7
  %408 = vsyncmov %s407
  %s409 = vpop.sfrf %408
  %p410 = scmp.eq.s32.totalorder %s409, 0
  %p411 = pneg %p410
  %413 = shalt.err (%p411)

</llo_original>
